<compile_context>
chip_gen: v7x
topology: tpu7x:2x2x1
jax: 0.10.0
libtpu: 0.0.40
codegen_flags: <defaults>
</compile_context>

<pallas_src>
import jax
import jax.numpy as jnp
from jax.experimental import pallas as pl
from jax.experimental.pallas import tpu as pltpu

MAX_LENGTH = 10   # attention span L
HIDDEN = 32       # hidden size H (small shapes, consistent with module semantics)
OUTPUT = 40       # output vocabulary size V
N_LAYERS = 1      # module default; kernel implements one relu+GRU step per token


def attn_decoder_kernel(
    # inputs (VMEM, all resident across the grid)
    embseq_ref, hid0_ref, enc_ref,
    we_ref, wh_ref, wih_ref, wca_ref, wout_ref,
    be_ref, bh_ref, bi_ref, bo_ref,
    # outputs (VMEM-resident, written back once per sequence)
    logp_ref, hout_ref, attn_ref,
    # scratch
    h_scr, eproj_scr, encca_scr, hseq_scr,
):
    H, L = HIDDEN, MAX_LENGTH
    f32, bf16 = jnp.float32, jnp.bfloat16

    t = pl.program_id(0)
    T = pl.num_programs(0)

    # ---------------- prologue: hoist all state-independent work ----------------
    @pl.when(t == 0)
    def _prologue():
        h_scr[...] = hid0_ref[...]
        # Batched emb projections for every decode step (attn + attn_combine
        # halves, biases folded):  (T, H) @ (H, L+H) + (1, L+H)
        eproj_scr[...] = (
            jnp.dot(embseq_ref[...], we_ref[...], preferred_element_type=f32)
            + be_ref[...])
        # Fold attn_combine's attn_applied branch into the encoder outputs:
        # comb_a = attn_w @ (enc @ Wcomb_a)  -> one per-step dot instead of two.
        encca_scr[...] = jnp.dot(enc_ref[...], wca_ref[...],
                                 preferred_element_type=f32).astype(bf16)

    # ---------------- recurrent step (serial dependence on h) -------------------
    eproj_t = eproj_scr[pl.ds(t, 1), :]                               # (1, L+H)
    hid = h_scr[...]                                                  # (1, H) f32

    # h_proj = [hid@Wattn_h | hid@Whh + b_hh (r,z,n)]                 (1, L+3H)
    h_proj = (jnp.dot(hid.astype(bf16), wh_ref[...],
                      preferred_element_type=f32) + bh_ref[...])

    # attn_weights = softmax( Linear_attn( cat(embedded, hidden) ) )
    logits = eproj_t[:, :L] + h_proj[:, :L]                           # (1, L)
    m = jnp.max(logits, axis=-1, keepdims=True)
    ex = jnp.exp(logits - m)
    attn_w = ex * pl.reciprocal(jnp.sum(ex, axis=-1, keepdims=True), approx=True)
    attn_ref[pl.ds(t, 1), :] = attn_w

    # output = relu( Linear_attn_combine( cat(embedded, attn_applied) ) )
    comb = eproj_t[:, L:] + jnp.dot(attn_w.astype(bf16), encca_scr[...],
                                    preferred_element_type=f32)       # (1, H)
    x = jnp.maximum(comb, 0.0)

    # GRU cell (seq_len=1, batch=1); gate order r, z, n (PyTorch convention)
    gi = jnp.dot(x.astype(bf16), wih_ref[...],
                 preferred_element_type=f32) + bi_ref[...]            # (1, 3H)
    gh = h_proj[:, L:]                                                # (1, 3H), b_hh folded

    r = jax.nn.sigmoid(gi[:, :H] + gh[:, :H])
    z = jax.nn.sigmoid(gi[:, H:2 * H] + gh[:, H:2 * H])
    n = jnp.tanh(gi[:, 2 * H:] + r * gh[:, 2 * H:])
    h_new = (1.0 - z) * n + z * hid                                   # (1, H)
    h_scr[...] = h_new
    hseq_scr[pl.ds(t, 1), :] = h_new

    # -------- epilogue: batched output projection + log_softmax (once) ----------
    @pl.when(t == T - 1)
    def _epilogue():
        hout_ref[...] = h_new
        out_logits = jnp.dot(hseq_scr[...].astype(bf16), wout_ref[...],
                             preferred_element_type=f32) + bo_ref[...]  # (T, V)
        m2 = jnp.max(out_logits, axis=-1, keepdims=True)
        lse = m2 + jnp.log(jnp.sum(jnp.exp(out_logits - m2), axis=-1, keepdims=True))
        logp_ref[...] = out_logits - lse


def pack_params(raw):
    """One-time parameter packing into lane-dense slabs (bf16 weights, f32 biases).

    PyTorch stores Linear weights as (out, in); we transpose to (in, out) so the
    kernel computes y = x @ W + b, and split/concat so fused dots line up.
    Called ONCE outside the per-call jit.
    """
    H, L = HIDDEN, MAX_LENGTH
    f32, bf16 = jnp.float32, jnp.bfloat16
    wa = raw["attn_w"].T        # (2H, L)   attn:        cat(emb, hid) -> L
    wc = raw["comb_w"].T        # (2H, H)   attn_combine: cat(emb, applied) -> H
    wih = raw["w_ih"].T         # (H, 3H)   GRU input weights, cols [r | z | n]
    whh = raw["w_hh"].T         # (H, 3H)   GRU hidden weights, cols [r | z | n]
    return {
        "emb_w": raw["emb_w"].astype(f32),                                   # (V, H)
        "W_e":   jnp.concatenate([wa[:H], wc[:H]], axis=1).astype(bf16),     # (H, L+H)
        "W_h":   jnp.concatenate([wa[H:], whh], axis=1).astype(bf16),        # (H, L+3H)
        "W_ih":  wih.astype(bf16),                                           # (H, 3H)
        "W_ca":  wc[H:].astype(bf16),                                        # (H, H)
        "W_out": raw["out_w"].T.astype(bf16),                                # (H, V)
        "b_e":   jnp.concatenate([raw["attn_b"], raw["comb_b"]]
                                 ).reshape(1, -1).astype(f32),               # (1, L+H)
        "b_h":   jnp.concatenate([jnp.zeros((L,), f32), raw["b_hh"]]
                                 ).reshape(1, -1).astype(f32),               # (1, L+3H)
        "b_i":   raw["b_ih"].reshape(1, -1).astype(f32),                     # (1, 3H)
        "b_o":   raw["out_b"].reshape(1, -1).astype(f32),                    # (1, V)
    }


@jax.jit
def attn_decoder_decode(packed, token_ids, hidden, encoder_outputs):
    """Teacher-forced decode of a whole token sequence in ONE kernel launch.

    token_ids: (T,) int32; hidden: (1,1,H); encoder_outputs: (L,H)
    Returns (log_probs (T,V), final hidden (1,1,H), attn_weights (T,L)).
    """
    H, L, V = HIDDEN, MAX_LENGTH, OUTPUT
    T = token_ids.shape[0]

    hid0 = hidden.reshape(1, H).astype(jnp.float32)
    enc_b = encoder_outputs.astype(jnp.bfloat16)
    # Embedding lookup (gather only, no FLOPs) + eval-mode dropout (identity).
    emb_seq = jnp.take(packed["emb_w"], token_ids.astype(jnp.int32), axis=0
                       ).astype(jnp.bfloat16)                                # (T, H)

    inputs = [
        emb_seq, hid0, enc_b,
        packed["W_e"], packed["W_h"], packed["W_ih"], packed["W_ca"], packed["W_out"],
        packed["b_e"], packed["b_h"], packed["b_i"], packed["b_o"],
    ]

    # Full-array blocks with constant index maps: every operand is DMA'd once
    # and stays resident in VMEM for the whole decode; outputs write back once.
    def full(shape):
        return pl.BlockSpec(shape, lambda t: (0, 0))

    grid_spec = pltpu.PrefetchScalarGridSpec(
        num_scalar_prefetch=0,
        grid=(T,),
        in_specs=[full(a.shape) for a in inputs],
        out_specs=(
            full((T, V)),
            full((1, H)),
            full((T, L)),
        ),
        scratch_shapes=[
            pltpu.VMEM((1, H), jnp.float32),          # carried hidden state
            pltpu.VMEM((T, L + H), jnp.float32),      # hoisted emb projections
            pltpu.VMEM((L, H), jnp.bfloat16),         # enc @ Wcomb_applied
            pltpu.VMEM((T, H), jnp.float32),          # per-step hidden states
        ],
    )

    logp, h_new, attn_w = pl.pallas_call(
        attn_decoder_kernel,
        out_shape=(
            jax.ShapeDtypeStruct((T, V), jnp.float32),
            jax.ShapeDtypeStruct((1, H), jnp.float32),
            jax.ShapeDtypeStruct((T, L), jnp.float32),
        ),
        grid_spec=grid_spec,
        compiler_params=pltpu.CompilerParams(
            dimension_semantics=("arbitrary",)),      # sequential recurrence over steps
    )(*inputs)
    return logp, h_new.reshape(1, 1, H), attn_w


def attn_decoder_forward(packed, input_idx, hidden, encoder_output, encoder_outputs):
    """Single-step forward matching AttnDecoderRNN.forward (eval mode).

    encoder_output is accepted for signature parity but unused (as in PyTorch).
    """
    del encoder_output
    token_ids = jnp.reshape(jnp.asarray(input_idx, jnp.int32), (1,))
    logp, h_new, attn_w = attn_decoder_decode(packed, token_ids, hidden, encoder_outputs)
    return logp, h_new, attn_w


def _reference_decode(raw, token_ids, hidden, encoder_outputs):
    """Plain-JAX f32 transcription of the PyTorch forward, applied sequentially."""
    H = HIDDEN
    h = hidden[0]                         # (1, H)
    logps, attns = [], []
    for i in range(token_ids.shape[0]):
        emb = raw["emb_w"][token_ids[i]].reshape(1, -1)
        cat = jnp.concatenate([emb, h], axis=1)
        aw = jax.nn.softmax(cat @ raw["attn_w"].T + raw["attn_b"], axis=1)
        applied = aw @ encoder_outputs
        comb = (jnp.concatenate([emb, applied], axis=1) @ raw["comb_w"].T
                + raw["comb_b"])
        x = jax.nn.relu(comb)
        gi = x @ raw["w_ih"].T + raw["b_ih"]
        gh = h @ raw["w_hh"].T + raw["b_hh"]
        r = jax.nn.sigmoid(gi[:, :H] + gh[:, :H])
        z = jax.nn.sigmoid(gi[:, H:2 * H] + gh[:, H:2 * H])
        n = jnp.tanh(gi[:, 2 * H:] + r * gh[:, 2 * H:])
        h = (1 - z) * n + z * h
        logp = jax.nn.log_softmax(h @ raw["out_w"].T + raw["out_b"], axis=1)
        logps.append(logp)
        attns.append(aw)
    return jnp.concatenate(logps, 0), h[None], jnp.concatenate(attns, 0)


def init_params(key):
    """Deterministic parameter init (PyTorch-like shapes, (out,in) convention)."""
    H, V, L = HIDDEN, OUTPUT, MAX_LENGTH
    ks = jax.random.split(key, 11)
    u = lambda k, shape, fan_in: jax.random.uniform(
        k, shape, jnp.float32, -1.0 / jnp.sqrt(fan_in), 1.0 / jnp.sqrt(fan_in))
    return {
        "emb_w":  jax.random.normal(ks[0], (V, H), jnp.float32),
        "attn_w": u(ks[1], (L, 2 * H), 2 * H), "attn_b": u(ks[2], (L,), 2 * H),
        "comb_w": u(ks[3], (H, 2 * H), 2 * H), "comb_b": u(ks[4], (H,), 2 * H),
        "w_ih":   u(ks[5], (3 * H, H), H),     "b_ih":   u(ks[6], (3 * H,), H),
        "w_hh":   u(ks[7], (3 * H, H), H),     "b_hh":   u(ks[8], (3 * H,), H),
        "out_w":  u(ks[9], (V, H), H),         "out_b":  u(ks[10], (V,), H),
    }


if __name__ == "__main__":
    key = jax.random.PRNGKey(0)
    kp, kh, ke, kt = jax.random.split(key, 4)

    params = init_params(kp)
    packed = pack_params(params)          # one-time packing, outside the jitted call

    T = 8                                                        # decode steps
    token_ids = jax.random.randint(kt, (T,), 0, OUTPUT, dtype=jnp.int32)
    hidden0 = jax.random.normal(kh, (1, 1, HIDDEN), jnp.float32)  # (1,1,H) like PyTorch
    encoder_outputs = jax.random.normal(ke, (MAX_LENGTH, HIDDEN), jnp.float32)
    encoder_output = encoder_outputs[-1]  # unused by the forward; kept for parity

    # Whole-sequence decode: one pallas_call, weights resident, hidden carried in VMEM.
    logp, h_fin, attn_w = attn_decoder_decode(packed, token_ids, hidden0, encoder_outputs)
    jax.block_until_ready((logp, h_fin, attn_w))

    # Single-step API matching the PyTorch forward signature.
    logp1, h1, aw1 = attn_decoder_forward(
        packed, token_ids[0], hidden0, encoder_output, encoder_outputs)
    jax.block_until_ready((logp1, h1, aw1))

    # Verify against an f32 plain-JAX transcription of the module (bf16 MXU inputs
    # in the kernel -> loose-but-meaningful tolerance).
    ref_logp, ref_h, ref_aw = _reference_decode(params, token_ids, hidden0, encoder_outputs)

    assert logp.shape == (T, OUTPUT) and attn_w.shape == (T, MAX_LENGTH)
    assert h_fin.shape == (1, 1, HIDDEN)
    assert logp1.shape == (1, OUTPUT) and h1.shape == (1, 1, HIDDEN)
    assert aw1.shape == (1, MAX_LENGTH)
    assert bool(jnp.all(jnp.isfinite(logp)))
    assert jnp.allclose(jnp.sum(jnp.exp(logp), axis=-1), 1.0, atol=1e-3)
    assert jnp.allclose(logp, ref_logp, atol=5e-2, rtol=5e-2)
    assert jnp.allclose(attn_w, ref_aw, atol=5e-2, rtol=5e-2)
    assert jnp.allclose(h_fin, ref_h, atol=5e-2, rtol=5e-2)
    # single-step path reproduces the first decode step
    assert jnp.allclose(logp1[0], logp[0], atol=1e-3)
    assert jnp.allclose(aw1[0], attn_w[0], atol=1e-3)

    print("KERNEL_OK")
</pallas_src>

<mosaic_0001>
module attributes {stable_mosaic.version = 11 : i64} {
  func.func @attn_decoder_kernel(%arg0: i32, %arg1: memref<8x32xbf16, #tpu.memory_space<vmem>>, %arg2: memref<1x32xf32, #tpu.memory_space<vmem>>, %arg3: memref<10x32xbf16, #tpu.memory_space<vmem>>, %arg4: memref<32x42xbf16, #tpu.memory_space<vmem>>, %arg5: memref<32x106xbf16, #tpu.memory_space<vmem>>, %arg6: memref<32x96xbf16, #tpu.memory_space<vmem>>, %arg7: memref<32x32xbf16, #tpu.memory_space<vmem>>, %arg8: memref<32x40xbf16, #tpu.memory_space<vmem>>, %arg9: memref<1x42xf32, #tpu.memory_space<vmem>>, %arg10: memref<1x106xf32, #tpu.memory_space<vmem>>, %arg11: memref<1x96xf32, #tpu.memory_space<vmem>>, %arg12: memref<1x40xf32, #tpu.memory_space<vmem>>, %arg13: memref<8x40xf32, #tpu.memory_space<vmem>>, %arg14: memref<1x32xf32, #tpu.memory_space<vmem>>, %arg15: memref<8x10xf32, #tpu.memory_space<vmem>>, %arg16: memref<1x32xf32, #tpu.memory_space<vmem>>, %arg17: memref<8x42xf32, #tpu.memory_space<vmem>>, %arg18: memref<10x32xbf16, #tpu.memory_space<vmem>>, %arg19: memref<8x32xf32, #tpu.memory_space<vmem>>) attributes {dimension_semantics = [#tpu.dimension_semantics<arbitrary>], iteration_bounds = array<i64: 8>, scalar_prefetch = 0 : i64, scratch_operands = 4 : i64, tpu.core_type = #tpu.core_type<tc>, window_params = [{pipeline_mode = #tpu.pipeline_mode<synchronous>, transform_indices = @transform_0, window_bounds = array<i64: 8, 32>}, {pipeline_mode = #tpu.pipeline_mode<synchronous>, transform_indices = @transform_1, window_bounds = array<i64: 1, 32>}, {pipeline_mode = #tpu.pipeline_mode<synchronous>, transform_indices = @transform_2, window_bounds = array<i64: 10, 32>}, {pipeline_mode = #tpu.pipeline_mode<synchronous>, transform_indices = @transform_3, window_bounds = array<i64: 32, 42>}, {pipeline_mode = #tpu.pipeline_mode<synchronous>, transform_indices = @transform_4, window_bounds = array<i64: 32, 106>}, {pipeline_mode = #tpu.pipeline_mode<synchronous>, transform_indices = @transform_5, window_bounds = array<i64: 32, 96>}, {pipeline_mode = #tpu.pipeline_mode<synchronous>, transform_indices = @transform_6, window_bounds = array<i64: 32, 32>}, {pipeline_mode = #tpu.pipeline_mode<synchronous>, transform_indices = @transform_7, window_bounds = array<i64: 32, 40>}, {pipeline_mode = #tpu.pipeline_mode<synchronous>, transform_indices = @transform_8, window_bounds = array<i64: 1, 42>}, {pipeline_mode = #tpu.pipeline_mode<synchronous>, transform_indices = @transform_9, window_bounds = array<i64: 1, 106>}, {pipeline_mode = #tpu.pipeline_mode<synchronous>, transform_indices = @transform_10, window_bounds = array<i64: 1, 96>}, {pipeline_mode = #tpu.pipeline_mode<synchronous>, transform_indices = @transform_11, window_bounds = array<i64: 1, 40>}, {pipeline_mode = #tpu.pipeline_mode<synchronous>, transform_indices = @transform_12, window_bounds = array<i64: 8, 40>}, {pipeline_mode = #tpu.pipeline_mode<synchronous>, transform_indices = @transform_13, window_bounds = array<i64: 1, 32>}, {pipeline_mode = #tpu.pipeline_mode<synchronous>, transform_indices = @transform_14, window_bounds = array<i64: 8, 10>}]} {
    %c0_i32 = arith.constant 0 : i32
    %0 = arith.cmpi eq, %arg0, %c0_i32 : i32
    %1 = arith.extui %0 : i1 to i32
    %c0_i32_0 = arith.constant 0 : i32
    %2 = arith.cmpi ne, %1, %c0_i32_0 : i32
    scf.if %2 {
      %c0_26 = arith.constant 0 : index
      %c0_27 = arith.constant 0 : index
      %71 = vector.load %arg2[%c0_26, %c0_27] : memref<1x32xf32, #tpu.memory_space<vmem>>, vector<1x32xf32>
      %c0_28 = arith.constant 0 : index
      %c0_29 = arith.constant 0 : index
      %72 = vector.load %arg16[%c0_28, %c0_29] : memref<1x32xf32, #tpu.memory_space<vmem>>, vector<1x32xf32>
      tpu.vector_store %arg16[%c0_28, %c0_29], %71 {strides = array<i32>} : memref<1x32xf32, #tpu.memory_space<vmem>>, vector<1x32xf32>,
      %c0_30 = arith.constant 0 : index
      %c0_31 = arith.constant 0 : index
      %73 = vector.load %arg1[%c0_30, %c0_31] : memref<8x32xbf16, #tpu.memory_space<vmem>>, vector<8x32xbf16>
      %c0_32 = arith.constant 0 : index
      %c0_33 = arith.constant 0 : index
      %74 = vector.load %arg4[%c0_32, %c0_33] : memref<32x42xbf16, #tpu.memory_space<vmem>>, vector<32x42xbf16>
      %cst_34 = arith.constant dense<0.000000e+00> : vector<8x42xf32>
      %75 = tpu.matmul %73, %74, %cst_34 {dimension_numbers = #tpu.dot_dimension_numbers<[1], [0], [0], [1], [0, 0, 1, 1], [], []>} : vector<8x32xbf16>, vector<32x42xbf16>, vector<8x42xf32> -> vector<8x42xf32>
      %c0_35 = arith.constant 0 : index
      %c0_36 = arith.constant 0 : index
      %76 = vector.load %arg9[%c0_35, %c0_36] : memref<1x42xf32, #tpu.memory_space<vmem>>, vector<1x42xf32>
      %77 = vector.broadcast %76 : vector<1x42xf32> to vector<8x42xf32>
      %78 = arith.addf %75, %77 : vector<8x42xf32>
      %c0_37 = arith.constant 0 : index
      %c0_38 = arith.constant 0 : index
      %79 = vector.load %arg17[%c0_37, %c0_38] : memref<8x42xf32, #tpu.memory_space<vmem>>, vector<8x42xf32>
      tpu.vector_store %arg17[%c0_37, %c0_38], %78 {strides = array<i32>} : memref<8x42xf32, #tpu.memory_space<vmem>>, vector<8x42xf32>,
      %c0_39 = arith.constant 0 : index
      %c0_40 = arith.constant 0 : index
      %80 = vector.load %arg3[%c0_39, %c0_40] : memref<10x32xbf16, #tpu.memory_space<vmem>>, vector<10x32xbf16>
      %c0_41 = arith.constant 0 : index
      %c0_42 = arith.constant 0 : index
      %81 = vector.load %arg7[%c0_41, %c0_42] : memref<32x32xbf16, #tpu.memory_space<vmem>>, vector<32x32xbf16>
      %cst_43 = arith.constant dense<0.000000e+00> : vector<10x32xf32>
      %82 = tpu.matmul %80, %81, %cst_43 {dimension_numbers = #tpu.dot_dimension_numbers<[1], [0], [0], [1], [0, 0, 1, 1], [], []>} : vector<10x32xbf16>, vector<32x32xbf16>, vector<10x32xf32> -> vector<10x32xf32>
      %83 = arith.truncf %82 : vector<10x32xf32> to vector<10x32xbf16>
      %c0_44 = arith.constant 0 : index
      %c0_45 = arith.constant 0 : index
      %84 = vector.load %arg18[%c0_44, %c0_45] : memref<10x32xbf16, #tpu.memory_space<vmem>>, vector<10x32xbf16>
      tpu.vector_store %arg18[%c0_44, %c0_45], %83 {strides = array<i32>} : memref<10x32xbf16, #tpu.memory_space<vmem>>, vector<10x32xbf16>,
    } else {
    }
    %3 = arith.index_cast %arg0 : i32 to index
    %c0 = arith.constant 0 : index
    %4 = vector.load %arg17[%3, %c0] : memref<8x42xf32, #tpu.memory_space<vmem>>, vector<1x42xf32>
    %c0_1 = arith.constant 0 : index
    %c0_2 = arith.constant 0 : index
    %5 = vector.load %arg16[%c0_1, %c0_2] : memref<1x32xf32, #tpu.memory_space<vmem>>, vector<1x32xf32>
    %6 = arith.truncf %5 : vector<1x32xf32> to vector<1x32xbf16>
    %c0_3 = arith.constant 0 : index
    %c0_4 = arith.constant 0 : index
    %7 = vector.load %arg5[%c0_3, %c0_4] : memref<32x106xbf16, #tpu.memory_space<vmem>>, vector<32x106xbf16>
    %cst = arith.constant dense<0.000000e+00> : vector<1x106xf32>
    %8 = tpu.matmul %6, %7, %cst {dimension_numbers = #tpu.dot_dimension_numbers<[1], [0], [0], [1], [0, 0, 1, 1], [], []>} : vector<1x32xbf16>, vector<32x106xbf16>, vector<1x106xf32> -> vector<1x106xf32>
    %c0_5 = arith.constant 0 : index
    %c0_6 = arith.constant 0 : index
    %9 = vector.load %arg10[%c0_5, %c0_6] : memref<1x106xf32, #tpu.memory_space<vmem>>, vector<1x106xf32>
    %10 = arith.addf %8, %9 : vector<1x106xf32>
    %11 = vector.extract_strided_slice %4 {offsets = [0, 0], sizes = [1, 10], strides = [1, 1]} : vector<1x42xf32> to vector<1x10xf32>
    %12 = vector.extract_strided_slice %10 {offsets = [0, 0], sizes = [1, 10], strides = [1, 1]} : vector<1x106xf32> to vector<1x10xf32>
    %13 = arith.addf %11, %12 : vector<1x10xf32>
    %cst_7 = arith.constant dense<0xFF800000> : vector<1xf32>
    %14 = vector.multi_reduction <maximumf>, %13, %cst_7 [1] : vector<1x10xf32> to vector<1xf32>
    %15 = vector.shape_cast %14 : vector<1xf32> to vector<1x1xf32>
    %16 = vector.broadcast %15 : vector<1x1xf32> to vector<1x10xf32>
    %17 = arith.subf %13, %16 : vector<1x10xf32>
    %18 = math.exp %17 : vector<1x10xf32>
    %cst_8 = arith.constant dense<0.000000e+00> : vector<1xf32>
    %19 = vector.multi_reduction <add>, %18, %cst_8 [1] : vector<1x10xf32> to vector<1xf32>
    %20 = vector.shape_cast %19 : vector<1xf32> to vector<1x1xf32>
    %21 = tpu.reciprocal %20 {approx = true} : vector<1x1xf32> -> vector<1x1xf32>
    %22 = vector.broadcast %21 : vector<1x1xf32> to vector<1x10xf32>
    %23 = arith.mulf %18, %22 : vector<1x10xf32>
    %24 = arith.index_cast %arg0 : i32 to index
    %c0_9 = arith.constant 0 : index
    %25 = vector.load %arg15[%24, %c0_9] : memref<8x10xf32, #tpu.memory_space<vmem>>, vector<1x10xf32>
    tpu.vector_store %arg15[%24, %c0_9], %23 {strides = array<i32>} : memref<8x10xf32, #tpu.memory_space<vmem>>, vector<1x10xf32>,
    %26 = vector.extract_strided_slice %4 {offsets = [0, 10], sizes = [1, 32], strides = [1, 1]} : vector<1x42xf32> to vector<1x32xf32>
    %27 = arith.truncf %23 : vector<1x10xf32> to vector<1x10xbf16>
    %c0_10 = arith.constant 0 : index
    %c0_11 = arith.constant 0 : index
    %28 = vector.load %arg18[%c0_10, %c0_11] : memref<10x32xbf16, #tpu.memory_space<vmem>>, vector<10x32xbf16>
    %cst_12 = arith.constant dense<0.000000e+00> : vector<1x32xf32>
    %29 = tpu.matmul %27, %28, %cst_12 {dimension_numbers = #tpu.dot_dimension_numbers<[1], [0], [0], [1], [0, 0, 1, 1], [], []>} : vector<1x10xbf16>, vector<10x32xbf16>, vector<1x32xf32> -> vector<1x32xf32>
    %30 = arith.addf %26, %29 : vector<1x32xf32>
    %cst_13 = arith.constant 0.000000e+00 : f32
    %31 = vector.broadcast %cst_13 : f32 to vector<1x32xf32>
    %32 = arith.maximumf %30, %31 : vector<1x32xf32>
    %33 = arith.truncf %32 : vector<1x32xf32> to vector<1x32xbf16>
    %c0_14 = arith.constant 0 : index
    %c0_15 = arith.constant 0 : index
    %34 = vector.load %arg6[%c0_14, %c0_15] : memref<32x96xbf16, #tpu.memory_space<vmem>>, vector<32x96xbf16>
    %cst_16 = arith.constant dense<0.000000e+00> : vector<1x96xf32>
    %35 = tpu.matmul %33, %34, %cst_16 {dimension_numbers = #tpu.dot_dimension_numbers<[1], [0], [0], [1], [0, 0, 1, 1], [], []>} : vector<1x32xbf16>, vector<32x96xbf16>, vector<1x96xf32> -> vector<1x96xf32>
    %c0_17 = arith.constant 0 : index
    %c0_18 = arith.constant 0 : index
    %36 = vector.load %arg11[%c0_17, %c0_18] : memref<1x96xf32, #tpu.memory_space<vmem>>, vector<1x96xf32>
    %37 = arith.addf %35, %36 : vector<1x96xf32>
    %38 = vector.extract_strided_slice %10 {offsets = [0, 10], sizes = [1, 96], strides = [1, 1]} : vector<1x106xf32> to vector<1x96xf32>
    %39 = vector.extract_strided_slice %37 {offsets = [0, 0], sizes = [1, 32], strides = [1, 1]} : vector<1x96xf32> to vector<1x32xf32>
    %40 = vector.extract_strided_slice %38 {offsets = [0, 0], sizes = [1, 32], strides = [1, 1]} : vector<1x96xf32> to vector<1x32xf32>
    %41 = arith.addf %39, %40 : vector<1x32xf32>
    %42 = arith.negf %41 : vector<1x32xf32>
    %43 = math.exp %42 : vector<1x32xf32>
    %cst_19 = arith.constant 1.000000e+00 : f32
    %44 = vector.broadcast %cst_19 : f32 to vector<1x32xf32>
    %45 = arith.addf %44, %43 : vector<1x32xf32>
    %46 = arith.divf %44, %45 : vector<1x32xf32>
    %47 = vector.extract_strided_slice %37 {offsets = [0, 32], sizes = [1, 32], strides = [1, 1]} : vector<1x96xf32> to vector<1x32xf32>
    %48 = vector.extract_strided_slice %38 {offsets = [0, 32], sizes = [1, 32], strides = [1, 1]} : vector<1x96xf32> to vector<1x32xf32>
    %49 = arith.addf %47, %48 : vector<1x32xf32>
    %50 = arith.negf %49 : vector<1x32xf32>
    %51 = math.exp %50 : vector<1x32xf32>
    %cst_20 = arith.constant 1.000000e+00 : f32
    %52 = vector.broadcast %cst_20 : f32 to vector<1x32xf32>
    %53 = arith.addf %52, %51 : vector<1x32xf32>
    %54 = arith.divf %52, %53 : vector<1x32xf32>
    %55 = vector.extract_strided_slice %37 {offsets = [0, 64], sizes = [1, 32], strides = [1, 1]} : vector<1x96xf32> to vector<1x32xf32>
    %56 = vector.extract_strided_slice %38 {offsets = [0, 64], sizes = [1, 32], strides = [1, 1]} : vector<1x96xf32> to vector<1x32xf32>
    %57 = arith.mulf %46, %56 : vector<1x32xf32>
    %58 = arith.addf %55, %57 : vector<1x32xf32>
    %59 = math.tanh %58 : vector<1x32xf32>
    %cst_21 = arith.constant 1.000000e+00 : f32
    %60 = vector.broadcast %cst_21 : f32 to vector<1x32xf32>
    %61 = arith.subf %60, %54 : vector<1x32xf32>
    %62 = arith.mulf %61, %59 : vector<1x32xf32>
    %63 = arith.mulf %54, %5 : vector<1x32xf32>
    %64 = arith.addf %62, %63 : vector<1x32xf32>
    %c0_22 = arith.constant 0 : index
    %c0_23 = arith.constant 0 : index
    %65 = vector.load %arg16[%c0_22, %c0_23] : memref<1x32xf32, #tpu.memory_space<vmem>>, vector<1x32xf32>
    tpu.vector_store %arg16[%c0_22, %c0_23], %64 {strides = array<i32>} : memref<1x32xf32, #tpu.memory_space<vmem>>, vector<1x32xf32>,
    %66 = arith.index_cast %arg0 : i32 to index
    %c0_24 = arith.constant 0 : index
    %67 = vector.load %arg19[%66, %c0_24] : memref<8x32xf32, #tpu.memory_space<vmem>>, vector<1x32xf32>
    tpu.vector_store %arg19[%66, %c0_24], %64 {strides = array<i32>} : memref<8x32xf32, #tpu.memory_space<vmem>>, vector<1x32xf32>,
    %c7_i32 = arith.constant 7 : i32
    %68 = arith.cmpi eq, %arg0, %c7_i32 : i32
    %69 = arith.extui %68 : i1 to i32
    %c0_i32_25 = arith.constant 0 : i32
    %70 = arith.cmpi ne, %69, %c0_i32_25 : i32
    scf.if %70 {
      %c0_26 = arith.constant 0 : index
      %c0_27 = arith.constant 0 : index
      %71 = vector.load %arg14[%c0_26, %c0_27] : memref<1x32xf32, #tpu.memory_space<vmem>>, vector<1x32xf32>
      tpu.vector_store %arg14[%c0_26, %c0_27], %64 {strides = array<i32>} : memref<1x32xf32, #tpu.memory_space<vmem>>, vector<1x32xf32>,
      %c0_28 = arith.constant 0 : index
      %c0_29 = arith.constant 0 : index
      %72 = vector.load %arg19[%c0_28, %c0_29] : memref<8x32xf32, #tpu.memory_space<vmem>>, vector<8x32xf32>
      %73 = arith.truncf %72 : vector<8x32xf32> to vector<8x32xbf16>
      %c0_30 = arith.constant 0 : index
      %c0_31 = arith.constant 0 : index
      %74 = vector.load %arg8[%c0_30, %c0_31] : memref<32x40xbf16, #tpu.memory_space<vmem>>, vector<32x40xbf16>
      %cst_32 = arith.constant dense<0.000000e+00> : vector<8x40xf32>
      %75 = tpu.matmul %73, %74, %cst_32 {dimension_numbers = #tpu.dot_dimension_numbers<[1], [0], [0], [1], [0, 0, 1, 1], [], []>} : vector<8x32xbf16>, vector<32x40xbf16>, vector<8x40xf32> -> vector<8x40xf32>
      %c0_33 = arith.constant 0 : index
      %c0_34 = arith.constant 0 : index
      %76 = vector.load %arg12[%c0_33, %c0_34] : memref<1x40xf32, #tpu.memory_space<vmem>>, vector<1x40xf32>
      %77 = vector.broadcast %76 : vector<1x40xf32> to vector<8x40xf32>
      %78 = arith.addf %75, %77 : vector<8x40xf32>
      %cst_35 = arith.constant dense<0xFF800000> : vector<8xf32>
      %79 = vector.multi_reduction <maximumf>, %78, %cst_35 [1] : vector<8x40xf32> to vector<8xf32>
      %80 = vector.shape_cast %79 : vector<8xf32> to vector<8x1xf32>
      %81 = vector.broadcast %80 : vector<8x1xf32> to vector<8x40xf32>
      %82 = arith.subf %78, %81 : vector<8x40xf32>
      %83 = math.exp %82 : vector<8x40xf32>
      %cst_36 = arith.constant dense<0.000000e+00> : vector<8xf32>
      %84 = vector.multi_reduction <add>, %83, %cst_36 [1] : vector<8x40xf32> to vector<8xf32>
      %85 = vector.shape_cast %84 : vector<8xf32> to vector<8x1xf32>
      %86 = math.log %85 : vector<8x1xf32>
      %87 = arith.addf %80, %86 : vector<8x1xf32>
      %88 = vector.broadcast %87 : vector<8x1xf32> to vector<8x40xf32>
      %89 = arith.subf %78, %88 : vector<8x40xf32>
      %c0_37 = arith.constant 0 : index
      %c0_38 = arith.constant 0 : index
      %90 = vector.load %arg13[%c0_37, %c0_38] : memref<8x40xf32, #tpu.memory_space<vmem>>, vector<8x40xf32>
      tpu.vector_store %arg13[%c0_37, %c0_38], %89 {strides = array<i32>} : memref<8x40xf32, #tpu.memory_space<vmem>>, vector<8x40xf32>,
    } else {
    }
    return
  }
  func.func @transform_0(%arg0: i32) -> (i32, i32) {
    %c0_i32 = arith.constant 0 : i32
    %c0_i32_0 = arith.constant 0 : i32
    %c0_i32_1 = arith.constant 0 : i32
    return %c0_i32, %c0_i32_0 : i32, i32
  }
  func.func @transform_1(%arg0: i32) -> (i32, i32) {
    %c0_i32 = arith.constant 0 : i32
    %c0_i32_0 = arith.constant 0 : i32
    %c0_i32_1 = arith.constant 0 : i32
    return %c0_i32, %c0_i32_0 : i32, i32
  }
  func.func @transform_2(%arg0: i32) -> (i32, i32) {
    %c0_i32 = arith.constant 0 : i32
    %c0_i32_0 = arith.constant 0 : i32
    %c0_i32_1 = arith.constant 0 : i32
    return %c0_i32, %c0_i32_0 : i32, i32
  }
  func.func @transform_3(%arg0: i32) -> (i32, i32) {
    %c0_i32 = arith.constant 0 : i32
    %c0_i32_0 = arith.constant 0 : i32
    %c0_i32_1 = arith.constant 0 : i32
    return %c0_i32, %c0_i32_0 : i32, i32
  }
  func.func @transform_4(%arg0: i32) -> (i32, i32) {
    %c0_i32 = arith.constant 0 : i32
    %c0_i32_0 = arith.constant 0 : i32
    %c0_i32_1 = arith.constant 0 : i32
    return %c0_i32, %c0_i32_0 : i32, i32
  }
  func.func @transform_5(%arg0: i32) -> (i32, i32) {
    %c0_i32 = arith.constant 0 : i32
    %c0_i32_0 = arith.constant 0 : i32
    %c0_i32_1 = arith.constant 0 : i32
    return %c0_i32, %c0_i32_0 : i32, i32
  }
  func.func @transform_6(%arg0: i32) -> (i32, i32) {
    %c0_i32 = arith.constant 0 : i32
    %c0_i32_0 = arith.constant 0 : i32
    %c0_i32_1 = arith.constant 0 : i32
    return %c0_i32, %c0_i32_0 : i32, i32
  }
  func.func @transform_7(%arg0: i32) -> (i32, i32) {
    %c0_i32 = arith.constant 0 : i32
    %c0_i32_0 = arith.constant 0 : i32
    %c0_i32_1 = arith.constant 0 : i32
    return %c0_i32, %c0_i32_0 : i32, i32
  }
  func.func @transform_8(%arg0: i32) -> (i32, i32) {
    %c0_i32 = arith.constant 0 : i32
    %c0_i32_0 = arith.constant 0 : i32
    %c0_i32_1 = arith.constant 0 : i32
    return %c0_i32, %c0_i32_0 : i32, i32
  }
  func.func @transform_9(%arg0: i32) -> (i32, i32) {
    %c0_i32 = arith.constant 0 : i32
    %c0_i32_0 = arith.constant 0 : i32
    %c0_i32_1 = arith.constant 0 : i32
    return %c0_i32, %c0_i32_0 : i32, i32
  }
  func.func @transform_10(%arg0: i32) -> (i32, i32) {
    %c0_i32 = arith.constant 0 : i32
    %c0_i32_0 = arith.constant 0 : i32
    %c0_i32_1 = arith.constant 0 : i32
    return %c0_i32, %c0_i32_0 : i32, i32
  }
  func.func @transform_11(%arg0: i32) -> (i32, i32) {
    %c0_i32 = arith.constant 0 : i32
    %c0_i32_0 = arith.constant 0 : i32
    %c0_i32_1 = arith.constant 0 : i32
    return %c0_i32, %c0_i32_0 : i32, i32
  }
  func.func @transform_12(%arg0: i32) -> (i32, i32) {
    %c0_i32 = arith.constant 0 : i32
    %c0_i32_0 = arith.constant 0 : i32
    %c0_i32_1 = arith.constant 0 : i32
    return %c0_i32, %c0_i32_0 : i32, i32
  }
  func.func @transform_13(%arg0: i32) -> (i32, i32) {
    %c0_i32 = arith.constant 0 : i32
    %c0_i32_0 = arith.constant 0 : i32
    %c0_i32_1 = arith.constant 0 : i32
    return %c0_i32, %c0_i32_0 : i32, i32
  }
  func.func @transform_14(%arg0: i32) -> (i32, i32) {
    %c0_i32 = arith.constant 0 : i32
    %c0_i32_0 = arith.constant 0 : i32
    %c0_i32_1 = arith.constant 0 : i32
    return %c0_i32, %c0_i32_0 : i32, i32
  }
}

</mosaic_0001>

<llo_original>
// kernel: attn_decoder_decode.1
$region0: #{attn_decoder_decode.1}
  #allocation0 [shape = 'u32[]', space=smem, size = 0x4, offset = 0x4, fixed_abs, tag = 'smem constant byte address 0x4 - core index']
  #allocation1 [shape = 'u32[144,128]{1,0:T(1,128)}', space=vmem, size = 0x12000, scoped, tag = 'internal scratch']
  #allocation2 [shape = 'f32[1,32]{1,0:T(1,128)}', space=vmem, size = 0x200, scoped, tag = 'scratch operand']
  #allocation3 [shape = 'f32[8,42]{1,0:T(8,128)}', space=vmem, size = 0x1000, scoped, tag = 'scratch operand']
  #allocation4 [shape = 'bf16[10,32]{1,0:T(8,128)(2,1)}', space=vmem, size = 0x1000, scoped, tag = 'scratch operand']
  #allocation5 [shape = 'f32[8,32]{1,0:T(8,128)}', space=vmem, size = 0x1000, scoped, tag = 'scratch operand']
  %s0 = inlined_call_operand.vmem [shape: bf16[8,32], index: 0, kind: input, shape index: {}]
  %s1 = inlined_call_operand.vmem [shape: f32[1,32], index: 1, kind: input, shape index: {}]
  %s2 = inlined_call_operand.vmem [shape: bf16[10,32], index: 2, kind: input, shape index: {}]
  %s3 = inlined_call_operand.vmem [shape: bf16[32,42], index: 3, kind: input, shape index: {}]
  %s4 = inlined_call_operand.vmem [shape: bf16[32,106], index: 4, kind: input, shape index: {}]
  %s5 = inlined_call_operand.vmem [shape: bf16[32,96], index: 5, kind: input, shape index: {}]
  %s6 = inlined_call_operand.vmem [shape: bf16[32,32], index: 6, kind: input, shape index: {}]
  %s7 = inlined_call_operand.vmem [shape: bf16[32,40], index: 7, kind: input, shape index: {}]
  %s8 = inlined_call_operand.vmem [shape: f32[1,42], index: 8, kind: input, shape index: {}]
  %s9 = inlined_call_operand.vmem [shape: f32[1,106], index: 9, kind: input, shape index: {}]
  %s10 = inlined_call_operand.vmem [shape: f32[1,96], index: 10, kind: input, shape index: {}]
  %s11 = inlined_call_operand.vmem [shape: f32[1,40], index: 11, kind: input, shape index: {}]
  %s12 = inlined_call_operand.hbm [shape: f32[8,40], index: 12, kind: output, shape index: {0}]
  %s13 = inlined_call_operand.hbm [shape: f32[1,32], index: 13, kind: output, shape index: {1}]
  %s14 = inlined_call_operand.hbm [shape: f32[8,10], index: 14, kind: output, shape index: {2}]
  %15 = xla_tuple %s12, %s13, %s14
  %s16 = sld [smem:[#allocation0]]
  $region105: #{attn_decoder_decode.1} parent=0
    _
  %s18 = ssub.s32 1, %s16
  %s19 = scalar_select 0, %s18, %s16
  $region1: #{attn_decoder_decode.1} parent=0
    #allocation6 [shape = 'u8[4096]{0}', space=vmem, size = 0x1000, scoped, tag = 'output window, operand 0, single buffered']
    #allocation7 [shape = 's32[2]{0}', space=sflag, size = 0x8, scoped, tag = 'scoped memory for attn_decoder_decode.1']
    #allocation8 [shape = 'u8[512]{0}', space=vmem, size = 0x400, scoped, tag = 'output window, operand 1, single buffered']
    #allocation9 [shape = 's32[1]{0}', space=sflag, size = 0x4, scoped, tag = 'scoped memory for attn_decoder_decode.1']
    #allocation10 [shape = 'u8[4096]{0}', space=vmem, size = 0x1000, scoped, tag = 'output window, operand 2, single buffered']
    %20 = vsyncpa [#allocation7], 0
    %21 = vsyncpa [#allocation9], 0
    loop: start=0, step=1, limit=10
    $region2: #{attn_decoder_decode.1} parent=1 // loop_pre_header
      _
    $region3: #{attn_decoder_decode.1} parent=1 // loop_header
      %s23 = sphi 0, %s27
      %p24 = scmp.ge.s32.totalorder %s23, 10
      %s31 = sphi 0, %s31
      %s33 = sphi 0, %s31
      %s34 = sphi 0, %s33
      %s48 = sphi 0, %s34
      %s52 = sphi 0, %s52
      %s54 = sphi 0, %s52
      %s55 = sphi 0, %s54
      %s69 = sphi 0, %s55
      %s73 = sphi 0, %s73
      %s75 = sphi 0, %s73
      %s76 = sphi 0, %s75
      %s90 = sphi 0, %s76
      %s94 = sphi 0, %s94
      %s96 = sphi 0, %s94
      %s97 = sphi 0, %s96
      %s111 = sphi 0, %s97
      %s115 = sphi 0, %s115
      %s117 = sphi 0, %s115
      %s118 = sphi 0, %s117
      %s132 = sphi 0, %s118
      %s136 = sphi 0, %s136
      %s138 = sphi 0, %s136
      %s139 = sphi 0, %s138
      %s153 = sphi 0, %s139
      %s157 = sphi 0, %s157
      %s159 = sphi 0, %s157
      %s160 = sphi 0, %s159
      %s174 = sphi 0, %s160
      %s178 = sphi 0, %s178
      %s180 = sphi 0, %s178
      %s181 = sphi 0, %s180
      %s195 = sphi 0, %s181
      %s199 = sphi 0, %s199
      %s201 = sphi 0, %s199
      %s202 = sphi 0, %s201
      %s216 = sphi 0, %s202
      %s220 = sphi 0, %s220
      %s222 = sphi 0, %s220
      %s223 = sphi 0, %s222
      %s237 = sphi 0, %s223
      %s241 = sphi 0, %s241
      %s243 = sphi 0, %s241
      %s244 = sphi 0, %s243
      %s258 = sphi 0, %s244
      %s262 = sphi 0, %s262
      %s264 = sphi 0, %s262
      %s265 = sphi 0, %s264
      %s279 = sphi 0, %s265
      %s283 = sphi 0, %s283
      %s285 = sphi 0, %s283
      %s286 = sphi 0, %s285
      %s300 = sphi 0, %s286
      %s304 = sphi 0, %s304
      %s306 = sphi 0, %s304
      %s307 = sphi 0, %s306
      %s321 = sphi 0, %s307
      %s325 = sphi 0, %s325
      %s327 = sphi 0, %s325
      %s328 = sphi 0, %s327
      %s342 = sphi 0, %s328
    $region4: #{attn_decoder_decode.1} parent=1 // loop_header_branch
      %26 = sbr.rel (%p24) target = $region8
    $region5: #{attn_decoder_decode.1} parent=1 // loop_body
      %s28 = ssub.s32 %s23, 1
      %s29 = ssub.s32 %s23, 2
      %s30 = sadd.s32 %s23, 1
      %s32 = sadd.s32 %s31, 1
      %p35 = scmp.eq.s32.totalorder %s23, 7
      %p36 = scmp.ne.s32.totalorder %s31, %s33
      %p37 = scmp.eq.s32.totalorder %s23, 0
      %p38 = por %p36, %p37
      %p39 = scmp.ne.s32.totalorder %s31, %s33
      %p40 = scmp.eq.s32.totalorder %s28, 7
      %p41 = por %p39, %p40
      %p42 = scmp.ne.s32.totalorder %s33, %s34
      %p43 = scmp.eq.s32.totalorder %s28, 0
      %p44 = por %p42, %p43
      %p45 = scmp.ne.s32.totalorder %s33, %s34
      %p46 = scmp.eq.s32.totalorder %s29, 7
      %p47 = por %p45, %p46
      %p49 = scmp.ne.s32.totalorder %s34, %s48
      %p50 = scmp.eq.s32.totalorder %s29, 0
      %p51 = por %p49, %p50
      %s53 = sadd.s32 %s52, 1
      %p56 = scmp.eq.s32.totalorder %s23, 7
      %p57 = scmp.ne.s32.totalorder %s52, %s54
      %p58 = scmp.eq.s32.totalorder %s23, 0
      %p59 = por %p57, %p58
      %p60 = scmp.ne.s32.totalorder %s52, %s54
      %p61 = scmp.eq.s32.totalorder %s28, 7
      %p62 = por %p60, %p61
      %p63 = scmp.ne.s32.totalorder %s54, %s55
      %p64 = scmp.eq.s32.totalorder %s28, 0
      %p65 = por %p63, %p64
      %p66 = scmp.ne.s32.totalorder %s54, %s55
      %p67 = scmp.eq.s32.totalorder %s29, 7
      %p68 = por %p66, %p67
      %p70 = scmp.ne.s32.totalorder %s55, %s69
      %p71 = scmp.eq.s32.totalorder %s29, 0
      %p72 = por %p70, %p71
      %s74 = sadd.s32 %s73, 1
      %p77 = scmp.eq.s32.totalorder %s23, 7
      %p78 = scmp.ne.s32.totalorder %s73, %s75
      %p79 = scmp.eq.s32.totalorder %s23, 0
      %p80 = por %p78, %p79
      %p81 = scmp.ne.s32.totalorder %s73, %s75
      %p82 = scmp.eq.s32.totalorder %s28, 7
      %p83 = por %p81, %p82
      %p84 = scmp.ne.s32.totalorder %s75, %s76
      %p85 = scmp.eq.s32.totalorder %s28, 0
      %p86 = por %p84, %p85
      %p87 = scmp.ne.s32.totalorder %s75, %s76
      %p88 = scmp.eq.s32.totalorder %s29, 7
      %p89 = por %p87, %p88
      %p91 = scmp.ne.s32.totalorder %s76, %s90
      %p92 = scmp.eq.s32.totalorder %s29, 0
      %p93 = por %p91, %p92
      %s95 = sadd.s32 %s94, 1
      %p98 = scmp.eq.s32.totalorder %s23, 7
      %p99 = scmp.ne.s32.totalorder %s94, %s96
      %p100 = scmp.eq.s32.totalorder %s23, 0
      %p101 = por %p99, %p100
      %p102 = scmp.ne.s32.totalorder %s94, %s96
      %p103 = scmp.eq.s32.totalorder %s28, 7
      %p104 = por %p102, %p103
      %p105 = scmp.ne.s32.totalorder %s96, %s97
      %p106 = scmp.eq.s32.totalorder %s28, 0
      %p107 = por %p105, %p106
      %p108 = scmp.ne.s32.totalorder %s96, %s97
      %p109 = scmp.eq.s32.totalorder %s29, 7
      %p110 = por %p108, %p109
      %p112 = scmp.ne.s32.totalorder %s97, %s111
      %p113 = scmp.eq.s32.totalorder %s29, 0
      %p114 = por %p112, %p113
      %s116 = sadd.s32 %s115, 1
      %p119 = scmp.eq.s32.totalorder %s23, 7
      %p120 = scmp.ne.s32.totalorder %s115, %s117
      %p121 = scmp.eq.s32.totalorder %s23, 0
      %p122 = por %p120, %p121
      %p123 = scmp.ne.s32.totalorder %s115, %s117
      %p124 = scmp.eq.s32.totalorder %s28, 7
      %p125 = por %p123, %p124
      %p126 = scmp.ne.s32.totalorder %s117, %s118
      %p127 = scmp.eq.s32.totalorder %s28, 0
      %p128 = por %p126, %p127
      %p129 = scmp.ne.s32.totalorder %s117, %s118
      %p130 = scmp.eq.s32.totalorder %s29, 7
      %p131 = por %p129, %p130
      %p133 = scmp.ne.s32.totalorder %s118, %s132
      %p134 = scmp.eq.s32.totalorder %s29, 0
      %p135 = por %p133, %p134
      %s137 = sadd.s32 %s136, 1
      %p140 = scmp.eq.s32.totalorder %s23, 7
      %p141 = scmp.ne.s32.totalorder %s136, %s138
      %p142 = scmp.eq.s32.totalorder %s23, 0
      %p143 = por %p141, %p142
      %p144 = scmp.ne.s32.totalorder %s136, %s138
      %p145 = scmp.eq.s32.totalorder %s28, 7
      %p146 = por %p144, %p145
      %p147 = scmp.ne.s32.totalorder %s138, %s139
      %p148 = scmp.eq.s32.totalorder %s28, 0
      %p149 = por %p147, %p148
      %p150 = scmp.ne.s32.totalorder %s138, %s139
      %p151 = scmp.eq.s32.totalorder %s29, 7
      %p152 = por %p150, %p151
      %p154 = scmp.ne.s32.totalorder %s139, %s153
      %p155 = scmp.eq.s32.totalorder %s29, 0
      %p156 = por %p154, %p155
      %s158 = sadd.s32 %s157, 1
      %p161 = scmp.eq.s32.totalorder %s23, 7
      %p162 = scmp.ne.s32.totalorder %s157, %s159
      %p163 = scmp.eq.s32.totalorder %s23, 0
      %p164 = por %p162, %p163
      %p165 = scmp.ne.s32.totalorder %s157, %s159
      %p166 = scmp.eq.s32.totalorder %s28, 7
      %p167 = por %p165, %p166
      %p168 = scmp.ne.s32.totalorder %s159, %s160
      %p169 = scmp.eq.s32.totalorder %s28, 0
      %p170 = por %p168, %p169
      %p171 = scmp.ne.s32.totalorder %s159, %s160
      %p172 = scmp.eq.s32.totalorder %s29, 7
      %p173 = por %p171, %p172
      %p175 = scmp.ne.s32.totalorder %s160, %s174
      %p176 = scmp.eq.s32.totalorder %s29, 0
      %p177 = por %p175, %p176
      %s179 = sadd.s32 %s178, 1
      %p182 = scmp.eq.s32.totalorder %s23, 7
      %p183 = scmp.ne.s32.totalorder %s178, %s180
      %p184 = scmp.eq.s32.totalorder %s23, 0
      %p185 = por %p183, %p184
      %p186 = scmp.ne.s32.totalorder %s178, %s180
      %p187 = scmp.eq.s32.totalorder %s28, 7
      %p188 = por %p186, %p187
      %p189 = scmp.ne.s32.totalorder %s180, %s181
      %p190 = scmp.eq.s32.totalorder %s28, 0
      %p191 = por %p189, %p190
      %p192 = scmp.ne.s32.totalorder %s180, %s181
      %p193 = scmp.eq.s32.totalorder %s29, 7
      %p194 = por %p192, %p193
      %p196 = scmp.ne.s32.totalorder %s181, %s195
      %p197 = scmp.eq.s32.totalorder %s29, 0
      %p198 = por %p196, %p197
      %s200 = sadd.s32 %s199, 1
      %p203 = scmp.eq.s32.totalorder %s23, 7
      %p204 = scmp.ne.s32.totalorder %s199, %s201
      %p205 = scmp.eq.s32.totalorder %s23, 0
      %p206 = por %p204, %p205
      %p207 = scmp.ne.s32.totalorder %s199, %s201
      %p208 = scmp.eq.s32.totalorder %s28, 7
      %p209 = por %p207, %p208
      %p210 = scmp.ne.s32.totalorder %s201, %s202
      %p211 = scmp.eq.s32.totalorder %s28, 0
      %p212 = por %p210, %p211
      %p213 = scmp.ne.s32.totalorder %s201, %s202
      %p214 = scmp.eq.s32.totalorder %s29, 7
      %p215 = por %p213, %p214
      %p217 = scmp.ne.s32.totalorder %s202, %s216
      %p218 = scmp.eq.s32.totalorder %s29, 0
      %p219 = por %p217, %p218
      %s221 = sadd.s32 %s220, 1
      %p224 = scmp.eq.s32.totalorder %s23, 7
      %p225 = scmp.ne.s32.totalorder %s220, %s222
      %p226 = scmp.eq.s32.totalorder %s23, 0
      %p227 = por %p225, %p226
      %p228 = scmp.ne.s32.totalorder %s220, %s222
      %p229 = scmp.eq.s32.totalorder %s28, 7
      %p230 = por %p228, %p229
      %p231 = scmp.ne.s32.totalorder %s222, %s223
      %p232 = scmp.eq.s32.totalorder %s28, 0
      %p233 = por %p231, %p232
      %p234 = scmp.ne.s32.totalorder %s222, %s223
      %p235 = scmp.eq.s32.totalorder %s29, 7
      %p236 = por %p234, %p235
      %p238 = scmp.ne.s32.totalorder %s223, %s237
      %p239 = scmp.eq.s32.totalorder %s29, 0
      %p240 = por %p238, %p239
      %s242 = sadd.s32 %s241, 1
      %p245 = scmp.eq.s32.totalorder %s23, 7
      %p246 = scmp.ne.s32.totalorder %s241, %s243
      %p247 = scmp.eq.s32.totalorder %s23, 0
      %p248 = por %p246, %p247
      %p249 = scmp.ne.s32.totalorder %s241, %s243
      %p250 = scmp.eq.s32.totalorder %s28, 7
      %p251 = por %p249, %p250
      %p252 = scmp.ne.s32.totalorder %s243, %s244
      %p253 = scmp.eq.s32.totalorder %s28, 0
      %p254 = por %p252, %p253
      %p255 = scmp.ne.s32.totalorder %s243, %s244
      %p256 = scmp.eq.s32.totalorder %s29, 7
      %p257 = por %p255, %p256
      %p259 = scmp.ne.s32.totalorder %s244, %s258
      %p260 = scmp.eq.s32.totalorder %s29, 0
      %p261 = por %p259, %p260
      %s263 = sadd.s32 %s262, 1
      %p266 = scmp.eq.s32.totalorder %s23, 7
      %p267 = scmp.ne.s32.totalorder %s262, %s264
      %p268 = scmp.eq.s32.totalorder %s23, 0
      %p269 = por %p267, %p268
      %p270 = scmp.ne.s32.totalorder %s262, %s264
      %p271 = scmp.eq.s32.totalorder %s28, 7
      %p272 = por %p270, %p271
      %p273 = scmp.ne.s32.totalorder %s264, %s265
      %p274 = scmp.eq.s32.totalorder %s28, 0
      %p275 = por %p273, %p274
      %p276 = scmp.ne.s32.totalorder %s264, %s265
      %p277 = scmp.eq.s32.totalorder %s29, 7
      %p278 = por %p276, %p277
      %p280 = scmp.ne.s32.totalorder %s265, %s279
      %p281 = scmp.eq.s32.totalorder %s29, 0
      %p282 = por %p280, %p281
      %s284 = sadd.s32 %s283, 1
      %p287 = scmp.eq.s32.totalorder %s23, 7
      %p288 = scmp.ne.s32.totalorder %s283, %s285
      %p289 = scmp.eq.s32.totalorder %s23, 0
      %p290 = por %p288, %p289
      %p291 = scmp.ne.s32.totalorder %s283, %s285
      %p292 = scmp.eq.s32.totalorder %s28, 7
      %p293 = por %p291, %p292
      %p294 = scmp.ne.s32.totalorder %s285, %s286
      %p295 = scmp.eq.s32.totalorder %s28, 0
      %p296 = por %p294, %p295
      %p297 = scmp.ne.s32.totalorder %s285, %s286
      %p298 = scmp.eq.s32.totalorder %s29, 7
      %p299 = por %p297, %p298
      %p301 = scmp.ne.s32.totalorder %s286, %s300
      %p302 = scmp.eq.s32.totalorder %s29, 0
      %p303 = por %p301, %p302
      %s305 = sadd.s32 %s304, 1
      %p308 = scmp.eq.s32.totalorder %s23, 7
      %p309 = scmp.ne.s32.totalorder %s304, %s306
      %p310 = scmp.eq.s32.totalorder %s23, 0
      %p311 = por %p309, %p310
      %p312 = scmp.ne.s32.totalorder %s304, %s306
      %p313 = scmp.eq.s32.totalorder %s28, 7
      %p314 = por %p312, %p313
      %p315 = scmp.ne.s32.totalorder %s306, %s307
      %p316 = scmp.eq.s32.totalorder %s28, 0
      %p317 = por %p315, %p316
      %p318 = scmp.ne.s32.totalorder %s306, %s307
      %p319 = scmp.eq.s32.totalorder %s29, 7
      %p320 = por %p318, %p319
      %p322 = scmp.ne.s32.totalorder %s307, %s321
      %p323 = scmp.eq.s32.totalorder %s29, 0
      %p324 = por %p322, %p323
      %s326 = sadd.s32 %s325, 1
      %p329 = scmp.eq.s32.totalorder %s23, 7
      %p330 = scmp.ne.s32.totalorder %s325, %s327
      %p331 = scmp.eq.s32.totalorder %s23, 0
      %p332 = por %p330, %p331
      %p333 = scmp.ne.s32.totalorder %s325, %s327
      %p334 = scmp.eq.s32.totalorder %s28, 7
      %p335 = por %p333, %p334
      %p336 = scmp.ne.s32.totalorder %s327, %s328
      %p337 = scmp.eq.s32.totalorder %s28, 0
      %p338 = por %p336, %p337
      %p339 = scmp.ne.s32.totalorder %s327, %s328
      %p340 = scmp.eq.s32.totalorder %s29, 7
      %p341 = por %p339, %p340
      %p343 = scmp.ne.s32.totalorder %s328, %s342
      %p344 = scmp.eq.s32.totalorder %s29, 0
      %p345 = por %p343, %p344
      %p346 = scmp.le.s32.totalorder 1, %s23
      %p347 = scmp.lt.s32.totalorder %s23, 9
      %p348 = pnand %p346, %p347
      %p349 = pneg %p348
      // Predicated region
      $region9: #{attn_decoder_decode.1} parent=5 // pred_check
        _
      $region10: #{attn_decoder_decode.1} parent=5 // pred_check_branch
        %351 = sbr.rel (%p348) target = $region12
      $region11: #{attn_decoder_decode.1} parent=5 // pred_region
        %s352 = ssub.s32 %s23, 1
        // Predicated region
        $region13: #{attn_decoder_decode.1} parent=11 // pred_check
          %p353 = pneg %p44
        $region14: #{attn_decoder_decode.1} parent=11 // pred_check_branch
          %355 = sbr.rel (%p353) target = $region16
        $region15: #{attn_decoder_decode.1} parent=11 // pred_region
          _
        $region16: #{attn_decoder_decode.1} parent=11 // pred_fallthru
          _
        // Predicated region
        $region17: #{attn_decoder_decode.1} parent=11 // pred_check
          %p356 = pneg %p65
        $region18: #{attn_decoder_decode.1} parent=11 // pred_check_branch
          %358 = sbr.rel (%p356) target = $region20
        $region19: #{attn_decoder_decode.1} parent=11 // pred_region
          _
        $region20: #{attn_decoder_decode.1} parent=11 // pred_fallthru
          _
        // Predicated region
        $region21: #{attn_decoder_decode.1} parent=11 // pred_check
          %p359 = pneg %p86
        $region22: #{attn_decoder_decode.1} parent=11 // pred_check_branch
          %361 = sbr.rel (%p359) target = $region24
        $region23: #{attn_decoder_decode.1} parent=11 // pred_region
          _
        $region24: #{attn_decoder_decode.1} parent=11 // pred_fallthru
          _
        // Predicated region
        $region25: #{attn_decoder_decode.1} parent=11 // pred_check
          %p362 = pneg %p107
        $region26: #{attn_decoder_decode.1} parent=11 // pred_check_branch
          %364 = sbr.rel (%p362) target = $region28
        $region27: #{attn_decoder_decode.1} parent=11 // pred_region
          _
        $region28: #{attn_decoder_decode.1} parent=11 // pred_fallthru
          _
        // Predicated region
        $region29: #{attn_decoder_decode.1} parent=11 // pred_check
          %p365 = pneg %p128
        $region30: #{attn_decoder_decode.1} parent=11 // pred_check_branch
          %367 = sbr.rel (%p365) target = $region32
        $region31: #{attn_decoder_decode.1} parent=11 // pred_region
          _
        $region32: #{attn_decoder_decode.1} parent=11 // pred_fallthru
          _
        // Predicated region
        $region33: #{attn_decoder_decode.1} parent=11 // pred_check
          %p368 = pneg %p149
        $region34: #{attn_decoder_decode.1} parent=11 // pred_check_branch
          %370 = sbr.rel (%p368) target = $region36
        $region35: #{attn_decoder_decode.1} parent=11 // pred_region
          _
        $region36: #{attn_decoder_decode.1} parent=11 // pred_fallthru
          _
        // Predicated region
        $region37: #{attn_decoder_decode.1} parent=11 // pred_check
          %p371 = pneg %p170
        $region38: #{attn_decoder_decode.1} parent=11 // pred_check_branch
          %373 = sbr.rel (%p371) target = $region40
        $region39: #{attn_decoder_decode.1} parent=11 // pred_region
          _
        $region40: #{attn_decoder_decode.1} parent=11 // pred_fallthru
          _
        // Predicated region
        $region41: #{attn_decoder_decode.1} parent=11 // pred_check
          %p374 = pneg %p191
        $region42: #{attn_decoder_decode.1} parent=11 // pred_check_branch
          %376 = sbr.rel (%p374) target = $region44
        $region43: #{attn_decoder_decode.1} parent=11 // pred_region
          _
        $region44: #{attn_decoder_decode.1} parent=11 // pred_fallthru
          _
        // Predicated region
        $region45: #{attn_decoder_decode.1} parent=11 // pred_check
          %p377 = pneg %p212
        $region46: #{attn_decoder_decode.1} parent=11 // pred_check_branch
          %379 = sbr.rel (%p377) target = $region48
        $region47: #{attn_decoder_decode.1} parent=11 // pred_region
          _
        $region48: #{attn_decoder_decode.1} parent=11 // pred_fallthru
          _
        // Predicated region
        $region49: #{attn_decoder_decode.1} parent=11 // pred_check
          %p380 = pneg %p233
        $region50: #{attn_decoder_decode.1} parent=11 // pred_check_branch
          %382 = sbr.rel (%p380) target = $region52
        $region51: #{attn_decoder_decode.1} parent=11 // pred_region
          _
        $region52: #{attn_decoder_decode.1} parent=11 // pred_fallthru
          _
        // Predicated region
        $region53: #{attn_decoder_decode.1} parent=11 // pred_check
          %p383 = pneg %p254
        $region54: #{attn_decoder_decode.1} parent=11 // pred_check_branch
          %385 = sbr.rel (%p383) target = $region56
        $region55: #{attn_decoder_decode.1} parent=11 // pred_region
          _
        $region56: #{attn_decoder_decode.1} parent=11 // pred_fallthru
          _
        // Predicated region
        $region57: #{attn_decoder_decode.1} parent=11 // pred_check
          %p386 = pneg %p275
        $region58: #{attn_decoder_decode.1} parent=11 // pred_check_branch
          %388 = sbr.rel (%p386) target = $region60
        $region59: #{attn_decoder_decode.1} parent=11 // pred_region
          _
        $region60: #{attn_decoder_decode.1} parent=11 // pred_fallthru
          _
      $region12: #{attn_decoder_decode.1} parent=5 // pred_fallthru
        _
      %p389 = scmp.lt.s32.totalorder %s23, 8
      // Predicated region
      $region61: #{attn_decoder_decode.1} parent=5 // pred_check
        %p390 = pneg %p389
      $region62: #{attn_decoder_decode.1} parent=5 // pred_check_branch
        %392 = sbr.rel (%p390) target = $region64
      $region63: #{attn_decoder_decode.1} parent=5 // pred_region
        _
      $region64: #{attn_decoder_decode.1} parent=5 // pred_fallthru
        _
      %p393 = scmp.le.s32.totalorder 1, %s23
      %p394 = scmp.lt.s32.totalorder %s23, 9
      %p395 = pnand %p393, %p394
      %p396 = pneg %p395
      // Predicated region
      $region65: #{attn_decoder_decode.1} parent=5 // pred_check
        _
      $region66: #{attn_decoder_decode.1} parent=5 // pred_check_branch
        %398 = sbr.rel (%p395) target = $region68
      $region67: #{attn_decoder_decode.1} parent=5 // pred_region
        %s399 = ssub.s32 %s23, 1
        %p400 = pneg %p44
        %p401 = pneg %p41
        %p402 = pneg %p65
        %p403 = pneg %p62
        %p404 = pneg %p86
        %p405 = pneg %p83
        %p406 = pneg %p107
        %p407 = pneg %p104
        %p408 = pneg %p128
        %p409 = pneg %p125
        %p410 = pneg %p149
        %p411 = pneg %p146
        %p412 = pneg %p170
        %p413 = pneg %p167
        %p414 = pneg %p191
        %p415 = pneg %p188
        %p416 = pneg %p212
        %p417 = pneg %p209
        %p418 = pneg %p233
        %p419 = pneg %p230
        %p420 = pneg %p254
        %p421 = pneg %p251
        %p422 = pneg %p275
        %p423 = pneg %p272
        %p424 = pneg %p296
        %p425 = pneg %p293
        %p426 = pneg %p317
        %p427 = pneg %p314
        %p428 = pneg %p338
        %p429 = pneg %p335
        %p431 = scmp.eq.s32.totalorder %s28, 0
        // Predicated region
        $region69: #{attn_decoder_decode.1} parent=67 // pred_check
          %p432 = pneg %p431
        $region70: #{attn_decoder_decode.1} parent=67 // pred_check_branch
          %434 = sbr.rel (%p432) target = $region72
        $region71: #{attn_decoder_decode.1} parent=67 // pred_region
          %v435 = vld [vmem:[%s1] sm:$0x1]
          %vm436 = vcmask 253952
          %437 = vst.msk [vmem:[#allocation2] sm:$0x1] %vm436, %v435
          %v438 = vld [vmem:[%s0] sm:$0xf]
          %v439 = vld [vmem:[%s3] sm:$0xf]
          %v440 = vld [vmem:[%s3 + $0x4] sm:$0xf]
          %v441 = vld [vmem:[%s3 + $0x8] sm:$0xf]
          %v442 = vld [vmem:[%s3 + $0xc] sm:$0xf]
          %v443 = vld [vmem:[%s8] sm:$0x1]
          %v445 = vlaneseq
          %v446 = vshrl.u32 %v445, 7
          %v447 = vsub.s32 0, %v446
          %v448 = vrot.slane %v443, %v447
          %v454 = vunpack.c.l.b16 %v439
          %v455 = vunpack.c.l.b16 %v440
          %v456 = vunpack.c.l.b16 %v441
          %v457 = vunpack.c.l.b16 %v442
          %v458 = vpack.c.b16 %v455, %v454
          %v459 = vpack.c.b16 %v457, %v456
          %vm462 = vcmask 261120
          %v464 = vsel %vm462, %v438, 0
          %466 = vmatprep.subr.bf16.mxu0 0
          %467 = vmatpush1.bf16.msra.mxu0 %v458
          %468 = vmatprep.subr.bf16.mxu0 0
          %469 = vmatpush1.bf16.msra.mxu0 %v459
          %470 = vmatprep.subr.bf16.mxu0 0
          %471 = vmatpush1.bf16.msra.mxu0 0
          %472 = vmatprep.subr.bf16.mxu0 0
          %473 = vmatpush1.bf16.msra.mxu0 0
          %474 = vmatprep.subr.bf16.mxu0 0
          %475 = vmatpush1.bf16.msra.mxu0 0
          %476 = vmatprep.subr.bf16.mxu0 0
          %477 = vmatpush1.bf16.msra.mxu0 0
          %478 = vmatprep.subr.bf16.mxu0 0
          %479 = vmatpush1.bf16.msra.mxu0 0
          %480 = vmatprep.subr.bf16.mxu0 0
          %481 = vmatpush1.bf16.msra.mxu0 0
          %482 = vmatprep.subr.bf16.mxu0 0
          %483 = vmatpush1.bf16.msra.mxu0 0
          %484 = vmatprep.subr.bf16.mxu0 0
          %485 = vmatpush1.bf16.msra.mxu0 0
          %486 = vmatprep.subr.bf16.mxu0 0
          %487 = vmatpush1.bf16.msra.mxu0 0
          %488 = vmatprep.subr.bf16.mxu0 0
          %489 = vmatpush1.bf16.msra.mxu0 0
          %490 = vmatprep.subr.bf16.mxu0 0
          %491 = vmatpush1.bf16.msra.mxu0 0
          %492 = vmatprep.subr.bf16.mxu0 0
          %493 = vmatpush1.bf16.msra.mxu0 0
          %494 = vmatprep.subr.bf16.mxu0 0
          %495 = vmatpush1.bf16.msra.mxu0 0
          %496 = vmatprep.subr.bf16.mxu0 0
          %497 = vmatpush1.bf16.msra.mxu0 0
          %498 = vmatprep.mubr.bf16.mxu0 0
          %499 = vmatmul.mubr.bf16.gmra.mrb[0].mxu0 %v464
          %v500 = vpop.f32.mrb[0].mxu0
          %v501 = vadd.f32 %v448, %v500
          %v502 = vpop.f32.mrb[0].mxu0
          %v503 = vpop.f32.mrb[0].mxu0
          %v504 = vpop.f32.mrb[0].mxu0
          %505 = vdwg.mxu0
          %vm506 = vcmask 343040
          %507 = vst.msk [vmem:[#allocation3] sm:$0xff] %vm506, %v501
          %v508 = vld [vmem:[%s2] sm:$0xf]
          %v509 = vld [vmem:[%s2 + $0x4] sm:$0x1]
          %v510 = vld [vmem:[%s6] sm:$0xf]
          %v511 = vld [vmem:[%s6 + $0x4] sm:$0xf]
          %v512 = vld [vmem:[%s6 + $0x8] sm:$0xf]
          %v513 = vld [vmem:[%s6 + $0xc] sm:$0xf]
          %v516 = vunpack.c.l.b16 %v508
          %v517 = vunpack.c.l.b16 %v509
          %v518 = vpack.c.b16 %v517, %v516
          %v523 = vunpack.c.l.b16 %v510
          %v524 = vunpack.c.l.b16 %v511
          %v525 = vunpack.c.l.b16 %v512
          %v526 = vunpack.c.l.b16 %v513
          %v527 = vpack.c.b16 %v524, %v523
          %v528 = vpack.c.b16 %v526, %v525
          %v532 = vsel %vm462, %v518, 0
          %534 = vmatprep.subr.bf16.mxu0 0
          %535 = vmatpush1.bf16.msra.mxu0 %v527
          %536 = vmatprep.subr.bf16.mxu0 0
          %537 = vmatpush1.bf16.msra.mxu0 %v528
          %538 = vmatprep.subr.bf16.mxu0 0
          %539 = vmatpush1.bf16.msra.mxu0 0
          %540 = vmatprep.subr.bf16.mxu0 0
          %541 = vmatpush1.bf16.msra.mxu0 0
          %542 = vmatprep.subr.bf16.mxu0 0
          %543 = vmatpush1.bf16.msra.mxu0 0
          %544 = vmatprep.subr.bf16.mxu0 0
          %545 = vmatpush1.bf16.msra.mxu0 0
          %546 = vmatprep.subr.bf16.mxu0 0
          %547 = vmatpush1.bf16.msra.mxu0 0
          %548 = vmatprep.subr.bf16.mxu0 0
          %549 = vmatpush1.bf16.msra.mxu0 0
          %550 = vmatprep.subr.bf16.mxu0 0
          %551 = vmatpush1.bf16.msra.mxu0 0
          %552 = vmatprep.subr.bf16.mxu0 0
          %553 = vmatpush1.bf16.msra.mxu0 0
          %554 = vmatprep.subr.bf16.mxu0 0
          %555 = vmatpush1.bf16.msra.mxu0 0
          %556 = vmatprep.subr.bf16.mxu0 0
          %557 = vmatpush1.bf16.msra.mxu0 0
          %558 = vmatprep.subr.bf16.mxu0 0
          %559 = vmatpush1.bf16.msra.mxu0 0
          %560 = vmatprep.subr.bf16.mxu0 0
          %561 = vmatpush1.bf16.msra.mxu0 0
          %562 = vmatprep.subr.bf16.mxu0 0
          %563 = vmatpush1.bf16.msra.mxu0 0
          %564 = vmatprep.subr.bf16.mxu0 0
          %565 = vmatpush1.bf16.msra.mxu0 0
          %566 = vmatprep.mubr.bf16.mxu0 0
          %567 = vmatmul.mubr.bf16.gmra.mrb[0].mxu0 %v532
          %v568 = vpop.f32.mrb[0].mxu0
          %v569 = vadd.f32 0.0, %v568
          %v570 = vpop.f32.mrb[0].mxu0
          %v571 = vpop.f32.mrb[0].mxu0
          %v572 = vadd.f32 0.0, %v571
          %v573 = vpop.f32.mrb[0].mxu0
          %574 = vdwg.mxu0
          %v575 = vpack.c.bf16 %v572, %v569
          %v577 = vunpack.c.l.b16 %v575
          %v578 = vunpack.c.h.b16 %v575
          %v579 = vpack.c.b16 %v577, %v577
          %v580 = vpack.c.b16 %v578, %v578
          %vm583 = vcmask 257024
          %584 = vst.msk [vmem:[#allocation4] sm:$0xf] %vm583, %v579
          %585 = vst.msk [vmem:[#allocation4 + $0x4] sm:$0x1] %vm436, %v580
        $region72: #{attn_decoder_decode.1} parent=67 // pred_fallthru
          _
        %s586 = scalar_lea.vmem [#allocation3], %s28
        %v587 = vld [vmem:[%s586] sm:$0x1]
        %v588 = vld [vmem:[#allocation2] sm:$0x1]
        %v589 = vpack.c.bf16 %v588, %v588
        %v590 = vld [vmem:[%s4] sm:$0xf]
        %v591 = vld [vmem:[%s4 + $0x4] sm:$0xf]
        %v592 = vld [vmem:[%s4 + $0x8] sm:$0xf]
        %v593 = vld [vmem:[%s4 + $0xc] sm:$0xf]
        %v594 = vld [vmem:[%s9] sm:$0x1]
        %v599 = vunpack.c.l.b16 %v590
        %v600 = vunpack.c.l.b16 %v591
        %v601 = vunpack.c.l.b16 %v592
        %v602 = vunpack.c.l.b16 %v593
        %v603 = vpack.c.b16 %v600, %v599
        %v604 = vpack.c.b16 %v602, %v601
        %vm607 = vcmask 261120
        %v609 = vsel %vm607, %v589, 0
        %611 = vmatprep.subr.bf16.mxu0 0
        %612 = vmatpush1.bf16.msra.mxu0 %v603
        %613 = vmatprep.subr.bf16.mxu0 0
        %614 = vmatpush1.bf16.msra.mxu0 %v604
        %615 = vmatprep.subr.bf16.mxu0 0
        %616 = vmatpush1.bf16.msra.mxu0 0
        %617 = vmatprep.subr.bf16.mxu0 0
        %618 = vmatpush1.bf16.msra.mxu0 0
        %619 = vmatprep.subr.bf16.mxu0 0
        %620 = vmatpush1.bf16.msra.mxu0 0
        %621 = vmatprep.subr.bf16.mxu0 0
        %622 = vmatpush1.bf16.msra.mxu0 0
        %623 = vmatprep.subr.bf16.mxu0 0
        %624 = vmatpush1.bf16.msra.mxu0 0
        %625 = vmatprep.subr.bf16.mxu0 0
        %626 = vmatpush1.bf16.msra.mxu0 0
        %627 = vmatprep.subr.bf16.mxu0 0
        %628 = vmatpush1.bf16.msra.mxu0 0
        %629 = vmatprep.subr.bf16.mxu0 0
        %630 = vmatpush1.bf16.msra.mxu0 0
        %631 = vmatprep.subr.bf16.mxu0 0
        %632 = vmatpush1.bf16.msra.mxu0 0
        %633 = vmatprep.subr.bf16.mxu0 0
        %634 = vmatpush1.bf16.msra.mxu0 0
        %635 = vmatprep.subr.bf16.mxu0 0
        %636 = vmatpush1.bf16.msra.mxu0 0
        %637 = vmatprep.subr.bf16.mxu0 0
        %638 = vmatpush1.bf16.msra.mxu0 0
        %639 = vmatprep.subr.bf16.mxu0 0
        %640 = vmatpush1.bf16.msra.mxu0 0
        %641 = vmatprep.subr.bf16.mxu0 0
        %642 = vmatpush1.bf16.msra.mxu0 0
        %643 = vmatprep.mubr.bf16.mxu0 0
        %644 = vmatmul.mubr.bf16.gmra.mrb[0].mxu0 %v609
        %v645 = vpop.f32.mrb[0].mxu0
        %v646 = vadd.f32 %v594, %v645
        %v647 = vpop.f32.mrb[0].mxu0
        %v648 = vpop.f32.mrb[0].mxu0
        %v649 = vpop.f32.mrb[0].mxu0
        %650 = vdwg.mxu0
        %v651 = vadd.f32 %v587, %v646
        %vm652 = vcmask 73728
        %v653 = vsel %vm652, %v651, -inf
        %654 = vmax.xlane.f32.xlu0 %v653
        %v655 = vpop.xlane.xlu0 %654
        %v656 = vsub.f32 %v651, %v655
        %v657 = vmul.f32 %v656, 1.442695
        %v658 = vpow.pop %v657
        %v659 = vsel %vm652, %v658, 0.0
        %660 = vadd.xlane.f32.xlu0 %v659
        %v661 = vpop.xlane.xlu0 %660
        %v662 = vrcp.pop %v661
        %v663 = vmul.f32 %v658, %v662
        %s664 = scalar_lea.vmem [#allocation10], %s28
        %665 = vst.msk [vmem:[%s664] sm:$0x1] %vm652, %v663
        %v666 = vpack.c.bf16 %v663, %v663
        %v667 = vld [vmem:[#allocation4] sm:$0xf]
        %v668 = vld [vmem:[#allocation4 + $0x4] sm:$0x1]
        %v671 = vunpack.c.l.b16 %v667
        %v672 = vunpack.c.l.b16 %v668
        %v673 = vpack.c.b16 %v672, %v671
        %vm674 = vcmask 80896
        %v676 = vsel %vm674, %v666, 0
        %vm678 = vcmask 1044480
        %v680 = vsel %vm678, %v673, 0
        %682 = vmatprep.subr.bf16.mxu0 0
        %683 = vmatpush1.bf16.msra.mxu0 %v680
        %684 = vmatprep.subr.bf16.mxu0 0
        %685 = vmatpush1.bf16.msra.mxu0 0
        %686 = vmatprep.subr.bf16.mxu0 0
        %687 = vmatpush1.bf16.msra.mxu0 0
        %688 = vmatprep.subr.bf16.mxu0 0
        %689 = vmatpush1.bf16.msra.mxu0 0
        %690 = vmatprep.subr.bf16.mxu0 0
        %691 = vmatpush1.bf16.msra.mxu0 0
        %692 = vmatprep.subr.bf16.mxu0 0
        %693 = vmatpush1.bf16.msra.mxu0 0
        %694 = vmatprep.subr.bf16.mxu0 0
        %695 = vmatpush1.bf16.msra.mxu0 0
        %696 = vmatprep.subr.bf16.mxu0 0
        %697 = vmatpush1.bf16.msra.mxu0 0
        %698 = vmatprep.subr.bf16.mxu0 0
        %699 = vmatpush1.bf16.msra.mxu0 0
        %700 = vmatprep.subr.bf16.mxu0 0
        %701 = vmatpush1.bf16.msra.mxu0 0
        %702 = vmatprep.subr.bf16.mxu0 0
        %703 = vmatpush1.bf16.msra.mxu0 0
        %704 = vmatprep.subr.bf16.mxu0 0
        %705 = vmatpush1.bf16.msra.mxu0 0
        %706 = vmatprep.subr.bf16.mxu0 0
        %707 = vmatpush1.bf16.msra.mxu0 0
        %708 = vmatprep.subr.bf16.mxu0 0
        %709 = vmatpush1.bf16.msra.mxu0 0
        %710 = vmatprep.subr.bf16.mxu0 0
        %711 = vmatpush1.bf16.msra.mxu0 0
        %712 = vmatprep.subr.bf16.mxu0 0
        %713 = vmatpush1.bf16.msra.mxu0 0
        %714 = vmatprep.mubr.bf16.mxu0 0
        %715 = vmatmul.mubr.bf16.gmra.mrb[0].mxu0 %v676
        %v716 = vpop.f32.mrb[0].mxu0
        %v717 = vadd.f32 0.0, %v716
        %v718 = vpop.f32.mrb[0].mxu0
        %v719 = vpop.f32.mrb[0].mxu0
        %v720 = vpop.f32.mrb[0].mxu0
        %721 = vdwg.mxu0
        %723 = vrot.lane.b32.xlu0 %v717, 10
        %v724 = vpop.permute.xlu0 %723
        %v726 = vadd.f32 %v587, %v724
        %v727 = vmax.f32 %v726, 0.0
        %v728 = vpack.c.bf16 %v727, %v727
        %v729 = vld [vmem:[%s5] sm:$0xf]
        %v730 = vld [vmem:[%s5 + $0x4] sm:$0xf]
        %v731 = vld [vmem:[%s5 + $0x8] sm:$0xf]
        %v732 = vld [vmem:[%s5 + $0xc] sm:$0xf]
        %v733 = vld [vmem:[%s10] sm:$0x1]
        %735 = vrot.lane.b32.xlu0 %v728, 118
        %v736 = vpop.permute.xlu0 %735
        %v741 = vunpack.c.l.b16 %v729
        %v742 = vunpack.c.l.b16 %v730
        %v743 = vunpack.c.l.b16 %v731
        %v744 = vunpack.c.l.b16 %v732
        %v745 = vpack.c.b16 %v742, %v741
        %v746 = vpack.c.b16 %v744, %v743
        %v750 = vsel %vm607, %v736, 0
        %752 = vmatprep.subr.bf16.mxu0 0
        %753 = vmatpush1.bf16.msra.mxu0 %v745
        %754 = vmatprep.subr.bf16.mxu0 0
        %755 = vmatpush1.bf16.msra.mxu0 %v746
        %756 = vmatprep.subr.bf16.mxu0 0
        %757 = vmatpush1.bf16.msra.mxu0 0
        %758 = vmatprep.subr.bf16.mxu0 0
        %759 = vmatpush1.bf16.msra.mxu0 0
        %760 = vmatprep.subr.bf16.mxu0 0
        %761 = vmatpush1.bf16.msra.mxu0 0
        %762 = vmatprep.subr.bf16.mxu0 0
        %763 = vmatpush1.bf16.msra.mxu0 0
        %764 = vmatprep.subr.bf16.mxu0 0
        %765 = vmatpush1.bf16.msra.mxu0 0
        %766 = vmatprep.subr.bf16.mxu0 0
        %767 = vmatpush1.bf16.msra.mxu0 0
        %768 = vmatprep.subr.bf16.mxu0 0
        %769 = vmatpush1.bf16.msra.mxu0 0
        %770 = vmatprep.subr.bf16.mxu0 0
        %771 = vmatpush1.bf16.msra.mxu0 0
        %772 = vmatprep.subr.bf16.mxu0 0
        %773 = vmatpush1.bf16.msra.mxu0 0
        %774 = vmatprep.subr.bf16.mxu0 0
        %775 = vmatpush1.bf16.msra.mxu0 0
        %776 = vmatprep.subr.bf16.mxu0 0
        %777 = vmatpush1.bf16.msra.mxu0 0
        %778 = vmatprep.subr.bf16.mxu0 0
        %779 = vmatpush1.bf16.msra.mxu0 0
        %780 = vmatprep.subr.bf16.mxu0 0
        %781 = vmatpush1.bf16.msra.mxu0 0
        %782 = vmatprep.subr.bf16.mxu0 0
        %783 = vmatpush1.bf16.msra.mxu0 0
        %784 = vmatprep.mubr.bf16.mxu0 0
        %785 = vmatmul.mubr.bf16.gmra.mrb[0].mxu0 %v750
        %v786 = vpop.f32.mrb[0].mxu0
        %v787 = vadd.f32 %v733, %v786
        %v788 = vpop.f32.mrb[0].mxu0
        %v789 = vpop.f32.mrb[0].mxu0
        %v790 = vpop.f32.mrb[0].mxu0
        %791 = vdwg.mxu0
        %793 = vrot.lane.b32.xlu0 %v646, 118
        %v794 = vpop.permute.xlu0 %793
        %v796 = vadd.f32 %v787, %v794
        %v797 = vxor.u32 %v796, 2147483648
        %v798 = vmul.f32 %v797, 1.442695
        %v799 = vpow.pop %v798
        %v800 = vadd.f32 %v799, 1.0
        %v801 = vrcp.pop %v800
        %v802 = vmul.f32 1.0, %v801
        %803 = vrot.lane.b32.xlu0 %v646, 54
        %v804 = vpop.permute.xlu0 %803
        %v806 = vmul.f32 %v802, %v804
        %808 = vrot.lane.b32.xlu0 %v806, 64
        %v809 = vpop.permute.xlu0 %808
        %v811 = vadd.f32 %v787, %v809
        %v812 = vtanh.pop %v811
        %v813 = vsub.f32 1.0, %v802
        %815 = vrot.lane.b32.xlu0 %v812, 96
        %v816 = vpop.permute.xlu0 %815
        %v818 = vmul.f32 %v813, %v816
        %v820 = vlaneseq
        %v821 = vshrl.u32 %v820, 7
        %v822 = vsub.s32 0, %v821
        %v823 = vrot.slane %v588, %v822
        %824 = vrot.lane.b32.xlu0 %v823, 32
        %v825 = vpop.permute.xlu0 %824
        %v827 = vmul.f32 %v802, %v825
        %v828 = vadd.f32 %v818, %v827
        %830 = vrot.lane.b32.xlu0 %v828, 96
        %v831 = vpop.permute.xlu0 %830
        %vm833 = vcmask 253952
        %834 = vst.msk [vmem:[#allocation2] sm:$0x1] %vm833, %v831
        %s835 = scalar_lea.vmem [#allocation5], %s28
        %836 = vst.msk [vmem:[%s835] sm:$0x1] %vm833, %v831
        %p837 = scmp.eq.s32.totalorder %s28, 7
        // Predicated region
        $region73: #{attn_decoder_decode.1} parent=67 // pred_check
          %p838 = pneg %p837
        $region74: #{attn_decoder_decode.1} parent=67 // pred_check_branch
          %840 = sbr.rel (%p838) target = $region76
        $region75: #{attn_decoder_decode.1} parent=67 // pred_region
          %841 = vst.msk [vmem:[#allocation8] sm:$0x1] %vm833, %v831
          %v842 = vld [vmem:[#allocation5] sm:$0xff]
          %v843 = vpack.c.bf16 %v842, %v842
          %v844 = vld [vmem:[%s7] sm:$0xf]
          %v845 = vld [vmem:[%s7 + $0x4] sm:$0xf]
          %v846 = vld [vmem:[%s7 + $0x8] sm:$0xf]
          %v847 = vld [vmem:[%s7 + $0xc] sm:$0xf]
          %v848 = vld [vmem:[%s11] sm:$0x1]
          %v850 = vlaneseq
          %v851 = vshrl.u32 %v850, 7
          %v852 = vsub.s32 0, %v851
          %v853 = vrot.slane %v848, %v852
          %v859 = vunpack.c.l.b16 %v844
          %v860 = vunpack.c.l.b16 %v845
          %v861 = vunpack.c.l.b16 %v846
          %v862 = vunpack.c.l.b16 %v847
          %v863 = vpack.c.b16 %v860, %v859
          %v864 = vpack.c.b16 %v862, %v861
          %v868 = vsel %vm607, %v843, 0
          %870 = vmatprep.subr.bf16.mxu0 0
          %871 = vmatpush1.bf16.msra.mxu0 %v863
          %872 = vmatprep.subr.bf16.mxu0 0
          %873 = vmatpush1.bf16.msra.mxu0 %v864
          %874 = vmatprep.subr.bf16.mxu0 0
          %875 = vmatpush1.bf16.msra.mxu0 0
          %876 = vmatprep.subr.bf16.mxu0 0
          %877 = vmatpush1.bf16.msra.mxu0 0
          %878 = vmatprep.subr.bf16.mxu0 0
          %879 = vmatpush1.bf16.msra.mxu0 0
          %880 = vmatprep.subr.bf16.mxu0 0
          %881 = vmatpush1.bf16.msra.mxu0 0
          %882 = vmatprep.subr.bf16.mxu0 0
          %883 = vmatpush1.bf16.msra.mxu0 0
          %884 = vmatprep.subr.bf16.mxu0 0
          %885 = vmatpush1.bf16.msra.mxu0 0
          %886 = vmatprep.subr.bf16.mxu0 0
          %887 = vmatpush1.bf16.msra.mxu0 0
          %888 = vmatprep.subr.bf16.mxu0 0
          %889 = vmatpush1.bf16.msra.mxu0 0
          %890 = vmatprep.subr.bf16.mxu0 0
          %891 = vmatpush1.bf16.msra.mxu0 0
          %892 = vmatprep.subr.bf16.mxu0 0
          %893 = vmatpush1.bf16.msra.mxu0 0
          %894 = vmatprep.subr.bf16.mxu0 0
          %895 = vmatpush1.bf16.msra.mxu0 0
          %896 = vmatprep.subr.bf16.mxu0 0
          %897 = vmatpush1.bf16.msra.mxu0 0
          %898 = vmatprep.subr.bf16.mxu0 0
          %899 = vmatpush1.bf16.msra.mxu0 0
          %900 = vmatprep.subr.bf16.mxu0 0
          %901 = vmatpush1.bf16.msra.mxu0 0
          %902 = vmatprep.mubr.bf16.mxu0 0
          %903 = vmatmul.mubr.bf16.gmra.mrb[0].mxu0 %v868
          %v904 = vpop.f32.mrb[0].mxu0
          %v905 = vadd.f32 %v853, %v904
          %v906 = vpop.f32.mrb[0].mxu0
          %v907 = vpop.f32.mrb[0].mxu0
          %v908 = vpop.f32.mrb[0].mxu0
          %909 = vdwg.mxu0
          %vm910 = vcmask 326656
          %v911 = vsel %vm910, %v905, -inf
          %912 = vmax.xlane.f32.xlu0 %v911
          %v913 = vpop.xlane.xlu0 %912
          %v914 = vsub.f32 %v905, %v913
          %v915 = vmul.f32 %v914, 1.442695
          %v916 = vpow.pop %v915
          %v917 = vsel %vm910, %v916, 0.0
          %918 = vadd.xlane.f32.xlu0 %v917
          %v919 = vpop.xlane.xlu0 %918
          %v920 = vlog2.pop %v919
          %v921 = vmul.f32 %v920, 0.6931472
          %v922 = vadd.f32 %v913, %v921
          %v923 = vsub.f32 %v905, %v922
          %924 = vst.msk [vmem:[#allocation6] sm:$0xff] %vm910, %v923
        $region76: #{attn_decoder_decode.1} parent=67 // pred_fallthru
          _
        // Predicated region
        $region77: #{attn_decoder_decode.1} parent=67 // pred_check
          %p925 = pneg %p293
        $region78: #{attn_decoder_decode.1} parent=67 // pred_check_branch
          %927 = sbr.rel (%p925) target = $region80
        $region79: #{attn_decoder_decode.1} parent=67 // pred_region
          %s929 = ssub.s32 128, 128
          %930 = vsyncadd [#allocation7], %s929
          %s932 = sshll.u32 [#allocation6], 4
          %s933 = int_to_ptr.vmem [resolvable:$true] %s932
          %935 = dma.vmem_to_hbm [thread:$0]  %s933, 128, %s12, [#allocation7]
        $region80: #{attn_decoder_decode.1} parent=67 // pred_fallthru
          _
        // Predicated region
        $region81: #{attn_decoder_decode.1} parent=67 // pred_check
          %p936 = pneg %p314
        $region82: #{attn_decoder_decode.1} parent=67 // pred_check_branch
          %938 = sbr.rel (%p936) target = $region84
        $region83: #{attn_decoder_decode.1} parent=67 // pred_region
          %s940 = ssub.s32 16, 16
          %941 = vsyncadd [#allocation9], %s940
          %s943 = sshll.u32 [#allocation8], 4
          %s944 = int_to_ptr.vmem [resolvable:$true] %s943
          %946 = dma.vmem_to_hbm [thread:$0]  %s944, 16, %s13, [#allocation9]
        $region84: #{attn_decoder_decode.1} parent=67 // pred_fallthru
          _
        // Predicated region
        $region85: #{attn_decoder_decode.1} parent=67 // pred_check
          %p947 = pneg %p335
        $region86: #{attn_decoder_decode.1} parent=67 // pred_check_branch
          %949 = sbr.rel (%p947) target = $region88
        $region87: #{attn_decoder_decode.1} parent=67 // pred_region
          %s951 = ssub.s32 128, 128
          %952 = vsyncadd [#allocation9], %s951
          %s954 = sshll.u32 [#allocation10], 4
          %s955 = int_to_ptr.vmem [resolvable:$true] %s954
          %957 = dma.vmem_to_hbm [thread:$0]  %s955, 128, %s14, [#allocation9]
        $region88: #{attn_decoder_decode.1} parent=67 // pred_fallthru
          _
        // Predicated region
        $region89: #{attn_decoder_decode.1} parent=67 // pred_check
          %p958 = pneg %p293
        $region90: #{attn_decoder_decode.1} parent=67 // pred_check_branch
          %960 = sbr.rel (%p958) target = $region92
        $region91: #{attn_decoder_decode.1} parent=67 // pred_region
          %961 = dma.done [#allocation7], 128
        $region92: #{attn_decoder_decode.1} parent=67 // pred_fallthru
          _
        // Predicated region
        $region93: #{attn_decoder_decode.1} parent=67 // pred_check
          %p962 = pneg %p314
        $region94: #{attn_decoder_decode.1} parent=67 // pred_check_branch
          %964 = sbr.rel (%p962) target = $region96
        $region95: #{attn_decoder_decode.1} parent=67 // pred_region
          %965 = dma.done [#allocation9], 16
        $region96: #{attn_decoder_decode.1} parent=67 // pred_fallthru
          _
        // Predicated region
        $region97: #{attn_decoder_decode.1} parent=67 // pred_check
          %p966 = pneg %p335
        $region98: #{attn_decoder_decode.1} parent=67 // pred_check_branch
          %968 = sbr.rel (%p966) target = $region100
        $region99: #{attn_decoder_decode.1} parent=67 // pred_region
          %969 = dma.done [#allocation9], 128
        $region100: #{attn_decoder_decode.1} parent=67 // pred_fallthru
          _
      $region68: #{attn_decoder_decode.1} parent=5 // pred_fallthru
        _
      %p970 = scmp.le.s32.totalorder 2, %s23
      // Predicated region
      $region101: #{attn_decoder_decode.1} parent=5 // pred_check
        %p971 = pneg %p970
      $region102: #{attn_decoder_decode.1} parent=5 // pred_check_branch
        %973 = sbr.rel (%p971) target = $region104
      $region103: #{attn_decoder_decode.1} parent=5 // pred_region
        %s974 = ssub.s32 %s23, 2
      $region104: #{attn_decoder_decode.1} parent=5 // pred_fallthru
        _
    $region6: #{attn_decoder_decode.1} parent=1 // loop_footer
      %s27 = sadd.s32 1, %s23
    $region7: #{attn_decoder_decode.1} parent=1 // loop_footer_branch
      %22 = sbr.rel target = $region3
    $region8: #{attn_decoder_decode.1} parent=1 // loop_exit
      _
    %975 = vsyncpa [#allocation7], 1
    %s976 = scalar_lea.sflag [#allocation7], 1
    %977 = vsyncpa %s976, 1
    %978 = vsyncpa [#allocation9], 1

</llo_original>
